<compile_context>
chip_gen: v7x
topology: tpu7x:2x2x1
jax: 0.10.0
libtpu: 0.0.40
codegen_flags: <defaults>
</compile_context>

<pallas_src>
import jax
import jax.numpy as jnp
from jax import lax
from jax.experimental import pallas as pl
from jax.experimental.pallas import tpu as pltpu


def _film_kernel_fused(sig_ref, wt_ref, b_ref, y_ref):
    """Single lane-dense (B, 2*Dout) output slab."""
    # sig: (B, Din), wt: (Din, 2*Dout), b: (1, 2*Dout). Native-dtype MXU operands,
    # f32 accumulation.
    y = jnp.dot(sig_ref[...], wt_ref[...], preferred_element_type=jnp.float32)
    y = y + b_ref[...].astype(jnp.float32)
    y_ref[...] = y.astype(y_ref.dtype)


def _film_kernel_split(sig_ref, wt_ref, b_ref, gamma_ref, beta_ref):
    """Two lane-dense (B, Dout) outputs (used when Dout is a multiple of 128)."""
    dout = gamma_ref.shape[-1]
    y = jnp.dot(sig_ref[...], wt_ref[...], preferred_element_type=jnp.float32)
    y = y + b_ref[...].astype(jnp.float32)
    # Dout is a multiple of 128 here, so both slices are lane-tile aligned.
    gamma_ref[...] = y[:, :dout].astype(gamma_ref.dtype)
    beta_ref[...] = y[:, dout:].astype(beta_ref.dtype)


def film(sigma, w, b):
    """Pallas Film forward. Returns (gamma, beta), each (B, Dout, 1)."""
    B, Din = sigma.shape
    Dout2, Din_w = w.shape
    assert Din == Din_w and Dout2 % 2 == 0
    Dout = Dout2 // 2

    # One-time layout plumbing in the wrapper (hoist to weight init in a model):
    wt = w.T                      # (Din, 2*Dout) -> plain NN contraction in-kernel
    b2d = b.reshape(1, Dout2)     # keep bias 2D for VMEM friendliness

    itemsize = jnp.dtype(sigma.dtype).itemsize
    cost = pl.CostEstimate(
        flops=2 * B * Din * Dout2,
        transcendentals=0,
        bytes_accessed=(B * Din + Din * Dout2 + Dout2 + B * Dout2) * itemsize,
    )
    cparams = pltpu.CompilerParams(dimension_semantics=("arbitrary",))

    in_specs = [
        pl.BlockSpec((B, Din), lambda i: (0, 0)),      # sigma (full block)
        pl.BlockSpec((Din, Dout2), lambda i: (0, 0)),  # pre-transposed weight
        pl.BlockSpec((1, Dout2), lambda i: (0, 0)),    # bias
    ]

    if Dout % 128 == 0:
        # Lane-dense dual outputs: no wrapper-side split / relayout copies.
        gamma, beta = pl.pallas_call(
            _film_kernel_split,
            out_shape=(
                jax.ShapeDtypeStruct((B, Dout), sigma.dtype),
                jax.ShapeDtypeStruct((B, Dout), sigma.dtype),
            ),
            grid_spec=pltpu.PrefetchScalarGridSpec(
                num_scalar_prefetch=0,
                grid=(1,),
                in_specs=in_specs,
                out_specs=(
                    pl.BlockSpec((B, Dout), lambda i: (0, 0)),
                    pl.BlockSpec((B, Dout), lambda i: (0, 0)),
                ),
            ),
            compiler_params=cparams,
            cost_estimate=cost,
        )(sigma, wt, b2d)
    else:
        # Dout < 128 (or not lane-aligned): keep the single 2*Dout-wide slab so
        # every in-kernel store is lane-dense; split outside (free layout op).
        y = pl.pallas_call(
            _film_kernel_fused,
            out_shape=jax.ShapeDtypeStruct((B, Dout2), sigma.dtype),
            grid_spec=pltpu.PrefetchScalarGridSpec(
                num_scalar_prefetch=0,
                grid=(1,),
                in_specs=in_specs,
                out_specs=pl.BlockSpec((B, Dout2), lambda i: (0, 0)),
            ),
            compiler_params=cparams,
            cost_estimate=cost,
        )(sigma, wt, b2d)
        gamma, beta = jnp.split(y, 2, axis=1)

    # unsqueeze(-1): layout plumbing, done outside the kernel.
    return gamma[..., None], beta[..., None]


def film_ref(sigma, w, b):
    """Pure-JAX reference mirroring the PyTorch forward."""
    y = jnp.dot(sigma, w.T, precision=lax.Precision.HIGHEST) + b[None, :]
    y = y[..., None]
    gamma, beta = jnp.split(y, 2, axis=1)
    return gamma, beta


def _run_case(key, B, input_dim, output_dim):
    ks, kw, kb = jax.random.split(key, 3)
    sigma = jax.random.normal(ks, (B, input_dim), dtype=jnp.float32)
    w = jax.random.normal(kw, (2 * output_dim, input_dim), dtype=jnp.float32) * 0.05
    b = jax.random.normal(kb, (2 * output_dim,), dtype=jnp.float32) * 0.01

    gamma, beta = film(sigma, w, b)
    gamma = jax.block_until_ready(gamma)
    beta = jax.block_until_ready(beta)

    gamma_ref, beta_ref = film_ref(sigma, w, b)
    assert gamma.shape == (B, output_dim, 1)
    assert beta.shape == (B, output_dim, 1)
    assert jnp.allclose(gamma, gamma_ref, atol=1e-4, rtol=1e-4), "gamma mismatch"
    assert jnp.allclose(beta, beta_ref, atol=1e-4, rtol=1e-4), "beta mismatch"


if __name__ == "__main__":
    key = jax.random.PRNGKey(0)
    k1, k2 = jax.random.split(key)

    # Case 1: demo shape (Dout=64 < 128) -> single lane-dense slab + wrapper split.
    _run_case(k1, B=2, input_dim=32, output_dim=64)

    # Case 2: Dout=128 (lane-aligned) -> dual lane-dense kernel outputs.
    _run_case(k2, B=2, input_dim=32, output_dim=128)

    print("KERNEL_OK")
</pallas_src>

<mosaic_0001>
module attributes {stable_mosaic.version = 11 : i64} {
  func.func @_film_kernel_fused(%arg0: i32, %arg1: memref<2x32xf32, #tpu.memory_space<vmem>>, %arg2: memref<32x128xf32, #tpu.memory_space<vmem>>, %arg3: memref<1x128xf32, #tpu.memory_space<vmem>>, %arg4: memref<2x128xf32, #tpu.memory_space<vmem>>) attributes {dimension_semantics = [#tpu.dimension_semantics<arbitrary>], iteration_bounds = array<i64: 1>, scalar_prefetch = 0 : i64, scratch_operands = 0 : i64, tpu.core_type = #tpu.core_type<tc>, window_params = [{pipeline_mode = #tpu.pipeline_mode<synchronous>, transform_indices = @transform_0, window_bounds = array<i64: 2, 32>}, {pipeline_mode = #tpu.pipeline_mode<synchronous>, transform_indices = @transform_1, window_bounds = array<i64: 32, 128>}, {pipeline_mode = #tpu.pipeline_mode<synchronous>, transform_indices = @transform_2, window_bounds = array<i64: 1, 128>}, {pipeline_mode = #tpu.pipeline_mode<synchronous>, transform_indices = @transform_3, window_bounds = array<i64: 2, 128>}]} {
    %c0 = arith.constant 0 : index
    %c0_0 = arith.constant 0 : index
    %0 = vector.load %arg1[%c0, %c0_0] : memref<2x32xf32, #tpu.memory_space<vmem>>, vector<2x32xf32>
    %c0_1 = arith.constant 0 : index
    %c0_2 = arith.constant 0 : index
    %1 = vector.load %arg2[%c0_1, %c0_2] : memref<32x128xf32, #tpu.memory_space<vmem>>, vector<32x128xf32>
    %cst = arith.constant dense<0.000000e+00> : vector<2x128xf32>
    %2 = tpu.matmul %0, %1, %cst {dimension_numbers = #tpu.dot_dimension_numbers<[1], [0], [0], [1], [0, 0, 1, 1], [], []>} : vector<2x32xf32>, vector<32x128xf32>, vector<2x128xf32> -> vector<2x128xf32>
    %c0_3 = arith.constant 0 : index
    %c0_4 = arith.constant 0 : index
    %3 = vector.load %arg3[%c0_3, %c0_4] : memref<1x128xf32, #tpu.memory_space<vmem>>, vector<1x128xf32>
    %4 = vector.broadcast %3 : vector<1x128xf32> to vector<2x128xf32>
    %5 = arith.addf %2, %4 : vector<2x128xf32>
    %c0_5 = arith.constant 0 : index
    %c0_6 = arith.constant 0 : index
    %6 = vector.load %arg4[%c0_5, %c0_6] : memref<2x128xf32, #tpu.memory_space<vmem>>, vector<2x128xf32>
    tpu.vector_store %arg4[%c0_5, %c0_6], %5 {strides = array<i32>} : memref<2x128xf32, #tpu.memory_space<vmem>>, vector<2x128xf32>,
    return
  }
  func.func @transform_0(%arg0: i32) -> (i32, i32) {
    %c0_i32 = arith.constant 0 : i32
    %c0_i32_0 = arith.constant 0 : i32
    %c0_i32_1 = arith.constant 0 : i32
    return %c0_i32, %c0_i32_0 : i32, i32
  }
  func.func @transform_1(%arg0: i32) -> (i32, i32) {
    %c0_i32 = arith.constant 0 : i32
    %c0_i32_0 = arith.constant 0 : i32
    %c0_i32_1 = arith.constant 0 : i32
    return %c0_i32, %c0_i32_0 : i32, i32
  }
  func.func @transform_2(%arg0: i32) -> (i32, i32) {
    %c0_i32 = arith.constant 0 : i32
    %c0_i32_0 = arith.constant 0 : i32
    %c0_i32_1 = arith.constant 0 : i32
    return %c0_i32, %c0_i32_0 : i32, i32
  }
  func.func @transform_3(%arg0: i32) -> (i32, i32) {
    %c0_i32 = arith.constant 0 : i32
    %c0_i32_0 = arith.constant 0 : i32
    %c0_i32_1 = arith.constant 0 : i32
    return %c0_i32, %c0_i32_0 : i32, i32
  }
}

</mosaic_0001>

<llo_original>
// kernel: tpu_custom_call.1
$region0: #{tpu_custom_call.1}
  #allocation0 [shape = 'u32[]', space=smem, size = 0x4, offset = 0x4, fixed_abs, tag = 'smem constant byte address 0x4 - core index']
  #allocation1 [shape = 'u32[144,128]{1,0:T(1,128)}', space=vmem, size = 0x12000, scoped, tag = 'internal scratch']
  %s0 = inlined_call_operand.hbm [shape: f32[2,32], index: 0, kind: input, shape index: {}]
  %s1 = inlined_call_operand.hbm [shape: f32[32,128], index: 1, kind: input, shape index: {}]
  %s2 = inlined_call_operand.vmem [shape: f32[1,128], index: 2, kind: input, shape index: {}]
  %s3 = inlined_call_operand.hbm [shape: f32[2,128], index: 3, kind: output, shape index: {}]
  %s4 = sld [smem:[#allocation0]]
  $region30: #{tpu_custom_call.1} parent=0
    _
  %s6 = ssub.s32 1, %s4
  %s7 = scalar_select 0, %s6, %s4
  $region1: #{tpu_custom_call.1} parent=0
    #allocation2 [shape = 'u8[1024]{0}', space=vmem, size = 0x400, scoped, tag = 'input window, operand 0, single buffered']
    #allocation3 [shape = 's32[1]{0}', space=sflag, size = 0x4, scoped, tag = 'scoped memory for tpu_custom_call.1']
    #allocation4 [shape = 's32[1]{0}', space=sflag, size = 0x4, scoped, tag = 'scoped memory for tpu_custom_call.1']
    #allocation5 [shape = 'u8[16384]{0}', space=vmem, size = 0x4000, scoped, tag = 'input window, operand 1, single buffered']
    #allocation6 [shape = 's32[1]{0}', space=sflag, size = 0x4, scoped, tag = 'scoped memory for tpu_custom_call.1']
    #allocation7 [shape = 'u8[1024]{0}', space=vmem, size = 0x400, scoped, tag = 'output window, operand 0, single buffered']
    %8 = vsyncpa [#allocation3], 0
    %9 = vsyncpa [#allocation6], 0
    %10 = vsyncpa [#allocation4], 0
    // Predicated region
    $region2: #{tpu_custom_call.1} parent=1 // pred_check
      _
    $region3: #{tpu_custom_call.1} parent=1 // pred_check_branch
      %12 = sbr.rel (0) target = $region5
    $region4: #{tpu_custom_call.1} parent=1 // pred_region
      %s14 = ssub.s32 32, 32
      %15 = vsyncadd [#allocation3], %s14
      %s17 = sshll.u32 [#allocation2], 4
      %s18 = int_to_ptr.vmem [resolvable:$true] %s17
      %20 = dma.hbm_to_vmem [thread:$0]  %s0, 32, %s18, [#allocation3]
    $region5: #{tpu_custom_call.1} parent=1 // pred_fallthru
      _
    // Predicated region
    $region6: #{tpu_custom_call.1} parent=1 // pred_check
      _
    $region7: #{tpu_custom_call.1} parent=1 // pred_check_branch
      %22 = sbr.rel (0) target = $region9
    $region8: #{tpu_custom_call.1} parent=1 // pred_region
      %s24 = ssub.s32 512, 512
      %25 = vsyncadd [#allocation6], %s24
      %s26 = sshll.u32 [#allocation5], 4
      %s27 = int_to_ptr.vmem [resolvable:$true] %s26
      %32 = dma.hbm_to_vmem [thread:$0]  %s1, 512, %s27, [#allocation6], 128, 128, 8
    $region9: #{tpu_custom_call.1} parent=1 // pred_fallthru
      _
    // Predicated region
    $region10: #{tpu_custom_call.1} parent=1 // pred_check
      _
    $region11: #{tpu_custom_call.1} parent=1 // pred_check_branch
      %34 = sbr.rel (0) target = $region13
    $region12: #{tpu_custom_call.1} parent=1 // pred_region
      _
    $region13: #{tpu_custom_call.1} parent=1 // pred_fallthru
      _
    // Predicated region
    $region14: #{tpu_custom_call.1} parent=1 // pred_check
      _
    $region15: #{tpu_custom_call.1} parent=1 // pred_check_branch
      %36 = sbr.rel (0) target = $region17
    $region16: #{tpu_custom_call.1} parent=1 // pred_region
      %37 = dma.done [#allocation3], 32
    $region17: #{tpu_custom_call.1} parent=1 // pred_fallthru
      _
    // Predicated region
    $region18: #{tpu_custom_call.1} parent=1 // pred_check
      _
    $region19: #{tpu_custom_call.1} parent=1 // pred_check_branch
      %39 = sbr.rel (0) target = $region21
    $region20: #{tpu_custom_call.1} parent=1 // pred_region
      %40 = dma.done [#allocation6], 512
    $region21: #{tpu_custom_call.1} parent=1 // pred_fallthru
      _
    %v41 = vld [vmem:[#allocation2] sm:$0x3]
    %v42 = vld [vmem:[#allocation5] sm:$0xff]
    %v43 = vld [vmem:[#allocation5 + $0x8] sm:$0xff]
    %v44 = vld [vmem:[#allocation5 + $0x10] sm:$0xff]
    %v45 = vld [vmem:[#allocation5 + $0x18] sm:$0xff]
    %v46 = vld [vmem:[%s2] sm:$0x1]
    %v48 = vlaneseq
    %v49 = vshrl.u32 %v48, 7
    %v50 = vsub.s32 0, %v49
    %v51 = vrot.slane %v46, %v50
    %vm53 = vcmask 261120
    %v55 = vsel %vm53, %v41, 0
    %57 = vmatprep.subr.mxu0 0.0
    %58 = vmatpush1.msra.mxu0 %v42
    %59 = vmatprep.subr.mxu0 0.0
    %60 = vmatpush1.msra.mxu0 %v43
    %61 = vmatprep.subr.mxu0 0.0
    %62 = vmatpush1.msra.mxu0 %v44
    %63 = vmatprep.subr.mxu0 0.0
    %64 = vmatpush1.msra.mxu0 %v45
    %65 = vmatprep.subr.mxu0 0.0
    %66 = vmatpush1.msra.mxu0 0.0
    %67 = vmatprep.subr.mxu0 0.0
    %68 = vmatpush1.msra.mxu0 0.0
    %69 = vmatprep.subr.mxu0 0.0
    %70 = vmatpush1.msra.mxu0 0.0
    %71 = vmatprep.subr.mxu0 0.0
    %72 = vmatpush1.msra.mxu0 0.0
    %73 = vmatprep.subr.mxu0 0.0
    %74 = vmatpush1.msra.mxu0 0.0
    %75 = vmatprep.subr.mxu0 0.0
    %76 = vmatpush1.msra.mxu0 0.0
    %77 = vmatprep.subr.mxu0 0.0
    %78 = vmatpush1.msra.mxu0 0.0
    %79 = vmatprep.subr.mxu0 0.0
    %80 = vmatpush1.msra.mxu0 0.0
    %81 = vmatprep.subr.mxu0 0.0
    %82 = vmatpush1.msra.mxu0 0.0
    %83 = vmatprep.subr.mxu0 0.0
    %84 = vmatpush1.msra.mxu0 0.0
    %85 = vmatprep.subr.mxu0 0.0
    %86 = vmatpush1.msra.mxu0 0.0
    %87 = vmatprep.subr.mxu0 0.0
    %88 = vmatpush1.msra.mxu0 0.0
    %89 = vmatprep.subr.mxu0 0.0
    %90 = vmatpush1.msra.mxu0 0.0
    %91 = vmatprep.subr.mxu0 0.0
    %92 = vmatpush1.msra.mxu0 0.0
    %93 = vmatprep.subr.mxu0 0.0
    %94 = vmatpush1.msra.mxu0 0.0
    %95 = vmatprep.subr.mxu0 0.0
    %96 = vmatpush1.msra.mxu0 0.0
    %97 = vmatprep.subr.mxu0 0.0
    %98 = vmatpush1.msra.mxu0 0.0
    %99 = vmatprep.subr.mxu0 0.0
    %100 = vmatpush1.msra.mxu0 0.0
    %101 = vmatprep.subr.mxu0 0.0
    %102 = vmatpush1.msra.mxu0 0.0
    %103 = vmatprep.subr.mxu0 0.0
    %104 = vmatpush1.msra.mxu0 0.0
    %105 = vmatprep.subr.mxu0 0.0
    %106 = vmatpush1.msra.mxu0 0.0
    %107 = vmatprep.subr.mxu0 0.0
    %108 = vmatpush1.msra.mxu0 0.0
    %109 = vmatprep.subr.mxu0 0.0
    %110 = vmatpush1.msra.mxu0 0.0
    %111 = vmatprep.subr.mxu0 0.0
    %112 = vmatpush1.msra.mxu0 0.0
    %113 = vmatprep.subr.mxu0 0.0
    %114 = vmatpush1.msra.mxu0 0.0
    %115 = vmatprep.subr.mxu0 0.0
    %116 = vmatpush1.msra.mxu0 0.0
    %117 = vmatprep.subr.mxu0 0.0
    %118 = vmatpush1.msra.mxu0 0.0
    %119 = vmatprep.subr.mxu0 0.0
    %120 = vmatpush1.msra.mxu0 0.0
    %121 = vmatprep.mubr.f32.mxu0 0.0
    %122 = vmatmul.mubr.f32.gmra.mrb[0].mxu0 %v55
    %v123 = vpop.f32.mrb[0].mxu0
    %v124 = vadd.f32 %v51, %v123
    %v125 = vpop.f32.mrb[0].mxu0
    %126 = vdwg.mxu0
    %127 = vst [vmem:[#allocation7] sm:$0x3] %v124
    // Predicated region
    $region22: #{tpu_custom_call.1} parent=1 // pred_check
      _
    $region23: #{tpu_custom_call.1} parent=1 // pred_check_branch
      %129 = sbr.rel (0) target = $region25
    $region24: #{tpu_custom_call.1} parent=1 // pred_region
      %s131 = ssub.s32 32, 32
      %132 = vsyncadd [#allocation4], %s131
      %s134 = sshll.u32 [#allocation7], 4
      %s135 = int_to_ptr.vmem [resolvable:$true] %s134
      %137 = dma.vmem_to_hbm [thread:$0]  %s135, 32, %s3, [#allocation4]
    $region25: #{tpu_custom_call.1} parent=1 // pred_fallthru
      _
    // Predicated region
    $region26: #{tpu_custom_call.1} parent=1 // pred_check
      _
    $region27: #{tpu_custom_call.1} parent=1 // pred_check_branch
      %139 = sbr.rel (0) target = $region29
    $region28: #{tpu_custom_call.1} parent=1 // pred_region
      %140 = dma.done [#allocation4], 32
    $region29: #{tpu_custom_call.1} parent=1 // pred_fallthru
      _
    %141 = vsyncpa [#allocation3], 1
    %142 = vsyncpa [#allocation6], 1
    %143 = vsyncpa [#allocation4], 1

</llo_original>
